<compile_context>
chip_gen: v7x
topology: tpu7x:2x2x1
jax: 0.10.0
libtpu: 0.0.40
codegen_flags: <defaults>
</compile_context>

<pallas_src>
import jax
import jax.numpy as jnp
from jax.experimental import pallas as pl
from jax.experimental.pallas import tpu as pltpu

N_FEATURES = 3
N_HIDDEN = 20
SEQ_LEN = 8
BATCH = 2

GATE_PAD = 32   # each gate occupies a 32-lane sub-block; 4 * 32 = one 128-lane vreg


def mv_lstm_kernel(x_ref, w_ih_ref, w_hh_ref, b_ref, w_lin_ref, b_lin_ref, out_ref):
    """Single grid-less invocation; everything is VMEM-resident.

    x_ref     : (S*B, F)        time-major input rows (row t*B + b holds x[b, t, :])
    w_ih_ref  : (F, 4*GATE_PAD) gate-packed W_ih^T (0.5 folded into i/f/o columns)
    w_hh_ref  : (H, 4*GATE_PAD) gate-packed W_hh^T (0.5 folded into i/f/o columns)
    b_ref     : (1, 4*GATE_PAD) gate-packed b_ih + b_hh (0.5 folded into i/f/o)
    w_lin_ref : (S, 1, H)       final Linear weight, per time step
    b_lin_ref : (1, 1)          final Linear bias
    out_ref   : (B, 1)          module output
    """
    H, GP = N_HIDDEN, GATE_PAD
    B = out_ref.shape[0]
    S = w_lin_ref.shape[0]

    w_hh = w_hh_ref[...]        # (H, 128): stays resident across the unrolled loop
    w_lin = w_lin_ref[...]      # (S, 1, H): hoisted, indexed by value below
    b_lin = b_lin_ref[...]      # (1, 1)

    # All x-side gate projections (+ bias) computed off the serial chain in one dot.
    xp = jnp.dot(x_ref[...], w_ih_ref[...],
                 preferred_element_type=jnp.float32) + b_ref[...]    # (S*B, 128)

    h = jnp.zeros((B, H), jnp.float32)
    c = jnp.zeros((B, H), jnp.float32)
    acc = jnp.zeros((B, H), jnp.float32)   # running (B,H) Linear accumulation

    for t in range(S):   # S=8: static unroll, all slice indices compile-time
        # Only the recurrent projection sits on the per-step critical path.
        z = xp[t * B:(t + 1) * B, :] + jnp.dot(
            h, w_hh, preferred_element_type=jnp.float32)              # (B, 128)

        # Single EUP tanh over the whole packed gate vreg.  i/f/o pre-activations
        # were pre-scaled by 0.5, so sigmoid(z) == 0.5*(tanh(z/2)+1); the g block
        # is unscaled so tanh(z_g) is used directly.
        tz = jnp.tanh(z)
        sg = 0.5 * (tz + 1.0)

        i_g = sg[:, 0 * GP:0 * GP + H]
        f_g = sg[:, 1 * GP:1 * GP + H]
        g_g = tz[:, 2 * GP:2 * GP + H]
        o_g = sg[:, 3 * GP:3 * GP + H]

        c = f_g * c + i_g * g_g
        h = o_g * jnp.tanh(c)

        # Incremental contribution of step t to l_linear(lstm_out.view(B, -1)),
        # kept elementwise; the single lane-reduction happens after the loop.
        acc = acc + h * w_lin[t]                                      # (B,H) * (1,H)

    out_ref[...] = jnp.sum(acc, axis=-1, keepdims=True) + b_lin


def mv_lstm_forward(x, params):
    """x: (B, S, F) float32 -> (B, 1) float32 (== MV_LSTM.forward with the fresh
    zero hidden state produced by init_hidden)."""
    B, S, F = x.shape
    H = N_HIDDEN
    GP = GATE_PAD

    # Fold sigmoid's z/2 pre-scale into i, f, o; leave g (plain tanh) unscaled.
    gate_scale = jnp.array([0.5, 0.5, 1.0, 0.5], jnp.float32)        # order i, f, g, o

    w_ih = params["w_ih"].reshape(4, H, F) * gate_scale[:, None, None]   # (4, H, F)
    w_hh = params["w_hh"].reshape(4, H, H) * gate_scale[:, None, None]   # (4, H, H)
    b = (params["b_ih"] + params["b_hh"]).reshape(4, H) * gate_scale[:, None]

    # Pack each gate into its own 32-lane sub-block of a single 128-lane RHS.
    w_ih_pad = (jnp.zeros((F, 4, GP), jnp.float32)
                .at[:, :, :H].set(jnp.transpose(w_ih, (2, 0, 1)))
                .reshape(F, 4 * GP))
    w_hh_pad = (jnp.zeros((H, 4, GP), jnp.float32)
                .at[:, :, :H].set(jnp.transpose(w_hh, (2, 0, 1)))
                .reshape(H, 4 * GP))
    b_pad = (jnp.zeros((1, 4, GP), jnp.float32)
             .at[0, :, :H].set(b)
             .reshape(1, 4 * GP))

    # Time-major rows so the pre-loop x-projection is one contiguous dot.
    x_tm = jnp.transpose(x, (1, 0, 2)).reshape(S * B, F)

    w_lin = params["w_lin"].reshape(S, 1, H)   # w_lin[t, 0, j] == W_lin[0, t*H + j]
    b_lin = params["b_lin"].reshape(1, 1)

    vmem = pl.BlockSpec(memory_space=pltpu.MemorySpace.VMEM)
    return pl.pallas_call(
        mv_lstm_kernel,
        out_shape=jax.ShapeDtypeStruct((B, 1), jnp.float32),
        in_specs=[vmem] * 6,
        out_specs=vmem,
    )(x_tm, w_ih_pad, w_hh_pad, b_pad, w_lin, b_lin)


def reference_forward(x, params):
    """Pure-JAX reference mirroring torch.nn.LSTM + Linear."""
    B, S, F = x.shape
    H = N_HIDDEN
    w_ih, w_hh = params["w_ih"], params["w_hh"]
    b = params["b_ih"] + params["b_hh"]

    def step(carry, x_t):
        h, c = carry
        gates = x_t @ w_ih.T + h @ w_hh.T + b
        i = jax.nn.sigmoid(gates[:, 0 * H:1 * H])
        f = jax.nn.sigmoid(gates[:, 1 * H:2 * H])
        g = jnp.tanh(gates[:, 2 * H:3 * H])
        o = jax.nn.sigmoid(gates[:, 3 * H:4 * H])
        c = f * c + i * g
        h = o * jnp.tanh(c)
        return (h, c), h

    init = (jnp.zeros((B, H), jnp.float32), jnp.zeros((B, H), jnp.float32))
    _, hs = jax.lax.scan(step, init, jnp.transpose(x, (1, 0, 2)))
    lstm_out = jnp.transpose(hs, (1, 0, 2)).reshape(B, -1)      # (B, S*H)
    return lstm_out @ params["w_lin"].T + params["b_lin"]       # (B, 1)


if __name__ == "__main__":
    H, F, S, B = N_HIDDEN, N_FEATURES, SEQ_LEN, BATCH
    key = jax.random.PRNGKey(0)
    ks = jax.random.split(key, 7)

    k_lstm = 1.0 / jnp.sqrt(jnp.float32(H))
    k_lin = 1.0 / jnp.sqrt(jnp.float32(S * H))
    params = {
        "w_ih": jax.random.uniform(ks[0], (4 * H, F), jnp.float32, -k_lstm, k_lstm),
        "w_hh": jax.random.uniform(ks[1], (4 * H, H), jnp.float32, -k_lstm, k_lstm),
        "b_ih": jax.random.uniform(ks[2], (4 * H,), jnp.float32, -k_lstm, k_lstm),
        "b_hh": jax.random.uniform(ks[3], (4 * H,), jnp.float32, -k_lstm, k_lstm),
        "w_lin": jax.random.uniform(ks[4], (1, S * H), jnp.float32, -k_lin, k_lin),
        "b_lin": jax.random.uniform(ks[5], (1,), jnp.float32, -k_lin, k_lin),
    }
    x = jax.random.normal(ks[6], (B, S, F), jnp.float32)

    out = mv_lstm_forward(x, params)
    jax.block_until_ready(out)

    ref = reference_forward(x, params)
    assert out.shape == (B, 1), out.shape
    assert jnp.allclose(out, ref, atol=1e-4, rtol=1e-4), (out, ref)
    print("KERNEL_OK")
</pallas_src>

<mosaic_0001>
module attributes {stable_mosaic.version = 11 : i64} {
  func.func @mv_lstm_kernel(%arg0: memref<16x3xf32, #tpu.memory_space<vmem>>, %arg1: memref<3x128xf32, #tpu.memory_space<vmem>>, %arg2: memref<20x128xf32, #tpu.memory_space<vmem>>, %arg3: memref<1x128xf32, #tpu.memory_space<vmem>>, %arg4: memref<8x1x20xf32, #tpu.memory_space<vmem>>, %arg5: memref<1x1xf32, #tpu.memory_space<vmem>>, %arg6: memref<2x1xf32, #tpu.memory_space<vmem>>) attributes {dimension_semantics = [], scalar_prefetch = 0 : i64, scratch_operands = 0 : i64, tpu.core_type = #tpu.core_type<tc>} {
    %c0 = arith.constant 0 : index
    %c0_0 = arith.constant 0 : index
    %0 = vector.load %arg2[%c0, %c0_0] : memref<20x128xf32, #tpu.memory_space<vmem>>, vector<20x128xf32>
    %c0_1 = arith.constant 0 : index
    %c0_2 = arith.constant 0 : index
    %c0_3 = arith.constant 0 : index
    %1 = vector.load %arg4[%c0_1, %c0_2, %c0_3] : memref<8x1x20xf32, #tpu.memory_space<vmem>>, vector<8x1x20xf32>
    %c0_4 = arith.constant 0 : index
    %c0_5 = arith.constant 0 : index
    %2 = vector.load %arg5[%c0_4, %c0_5] : memref<1x1xf32, #tpu.memory_space<vmem>>, vector<1x1xf32>
    %c0_6 = arith.constant 0 : index
    %c0_7 = arith.constant 0 : index
    %3 = vector.load %arg0[%c0_6, %c0_7] : memref<16x3xf32, #tpu.memory_space<vmem>>, vector<16x3xf32>
    %c0_8 = arith.constant 0 : index
    %c0_9 = arith.constant 0 : index
    %4 = vector.load %arg1[%c0_8, %c0_9] : memref<3x128xf32, #tpu.memory_space<vmem>>, vector<3x128xf32>
    %cst = arith.constant dense<0.000000e+00> : vector<16x128xf32>
    %5 = tpu.matmul %3, %4, %cst {dimension_numbers = #tpu.dot_dimension_numbers<[1], [0], [0], [1], [0, 0, 1, 1], [], []>} : vector<16x3xf32>, vector<3x128xf32>, vector<16x128xf32> -> vector<16x128xf32>
    %c0_10 = arith.constant 0 : index
    %c0_11 = arith.constant 0 : index
    %6 = vector.load %arg3[%c0_10, %c0_11] : memref<1x128xf32, #tpu.memory_space<vmem>>, vector<1x128xf32>
    %7 = vector.broadcast %6 : vector<1x128xf32> to vector<16x128xf32>
    %8 = arith.addf %5, %7 : vector<16x128xf32>
    %cst_12 = arith.constant 0.000000e+00 : f32
    %9 = vector.broadcast %cst_12 : f32 to vector<2x20xf32>
    %cst_13 = arith.constant 0.000000e+00 : f32
    %10 = vector.broadcast %cst_13 : f32 to vector<2x20xf32>
    %cst_14 = arith.constant 0.000000e+00 : f32
    %11 = vector.broadcast %cst_14 : f32 to vector<2x20xf32>
    %12 = vector.extract_strided_slice %8 {offsets = [0, 0], sizes = [2, 128], strides = [1, 1]} : vector<16x128xf32> to vector<2x128xf32>
    %cst_15 = arith.constant dense<0.000000e+00> : vector<2x128xf32>
    %13 = tpu.matmul %9, %0, %cst_15 {dimension_numbers = #tpu.dot_dimension_numbers<[1], [0], [0], [1], [0, 0, 1, 1], [], []>} : vector<2x20xf32>, vector<20x128xf32>, vector<2x128xf32> -> vector<2x128xf32>
    %14 = arith.addf %12, %13 : vector<2x128xf32>
    %15 = math.tanh %14 : vector<2x128xf32>
    %cst_16 = arith.constant 1.000000e+00 : f32
    %16 = vector.broadcast %cst_16 : f32 to vector<2x128xf32>
    %17 = arith.addf %15, %16 : vector<2x128xf32>
    %cst_17 = arith.constant 5.000000e-01 : f32
    %18 = vector.broadcast %cst_17 : f32 to vector<2x128xf32>
    %19 = arith.mulf %18, %17 : vector<2x128xf32>
    %20 = vector.extract_strided_slice %19 {offsets = [0, 0], sizes = [2, 20], strides = [1, 1]} : vector<2x128xf32> to vector<2x20xf32>
    %21 = vector.extract_strided_slice %19 {offsets = [0, 32], sizes = [2, 20], strides = [1, 1]} : vector<2x128xf32> to vector<2x20xf32>
    %22 = vector.extract_strided_slice %15 {offsets = [0, 64], sizes = [2, 20], strides = [1, 1]} : vector<2x128xf32> to vector<2x20xf32>
    %23 = vector.extract_strided_slice %19 {offsets = [0, 96], sizes = [2, 20], strides = [1, 1]} : vector<2x128xf32> to vector<2x20xf32>
    %24 = arith.mulf %21, %10 : vector<2x20xf32>
    %25 = arith.mulf %20, %22 : vector<2x20xf32>
    %26 = arith.addf %24, %25 : vector<2x20xf32>
    %27 = math.tanh %26 : vector<2x20xf32>
    %28 = arith.mulf %23, %27 : vector<2x20xf32>
    %29 = vector.extract_strided_slice %1 {offsets = [0, 0, 0], sizes = [1, 1, 20], strides = [1, 1, 1]} : vector<8x1x20xf32> to vector<1x1x20xf32>
    %30 = vector.shape_cast %29 : vector<1x1x20xf32> to vector<1x20xf32>
    %31 = vector.broadcast %30 : vector<1x20xf32> to vector<2x20xf32>
    %32 = arith.mulf %28, %31 : vector<2x20xf32>
    %33 = arith.addf %11, %32 : vector<2x20xf32>
    %34 = vector.extract_strided_slice %8 {offsets = [2, 0], sizes = [2, 128], strides = [1, 1]} : vector<16x128xf32> to vector<2x128xf32>
    %cst_18 = arith.constant dense<0.000000e+00> : vector<2x128xf32>
    %35 = tpu.matmul %28, %0, %cst_18 {dimension_numbers = #tpu.dot_dimension_numbers<[1], [0], [0], [1], [0, 0, 1, 1], [], []>} : vector<2x20xf32>, vector<20x128xf32>, vector<2x128xf32> -> vector<2x128xf32>
    %36 = arith.addf %34, %35 : vector<2x128xf32>
    %37 = math.tanh %36 : vector<2x128xf32>
    %cst_19 = arith.constant 1.000000e+00 : f32
    %38 = vector.broadcast %cst_19 : f32 to vector<2x128xf32>
    %39 = arith.addf %37, %38 : vector<2x128xf32>
    %cst_20 = arith.constant 5.000000e-01 : f32
    %40 = vector.broadcast %cst_20 : f32 to vector<2x128xf32>
    %41 = arith.mulf %40, %39 : vector<2x128xf32>
    %42 = vector.extract_strided_slice %41 {offsets = [0, 0], sizes = [2, 20], strides = [1, 1]} : vector<2x128xf32> to vector<2x20xf32>
    %43 = vector.extract_strided_slice %41 {offsets = [0, 32], sizes = [2, 20], strides = [1, 1]} : vector<2x128xf32> to vector<2x20xf32>
    %44 = vector.extract_strided_slice %37 {offsets = [0, 64], sizes = [2, 20], strides = [1, 1]} : vector<2x128xf32> to vector<2x20xf32>
    %45 = vector.extract_strided_slice %41 {offsets = [0, 96], sizes = [2, 20], strides = [1, 1]} : vector<2x128xf32> to vector<2x20xf32>
    %46 = arith.mulf %43, %26 : vector<2x20xf32>
    %47 = arith.mulf %42, %44 : vector<2x20xf32>
    %48 = arith.addf %46, %47 : vector<2x20xf32>
    %49 = math.tanh %48 : vector<2x20xf32>
    %50 = arith.mulf %45, %49 : vector<2x20xf32>
    %51 = vector.extract_strided_slice %1 {offsets = [1, 0, 0], sizes = [1, 1, 20], strides = [1, 1, 1]} : vector<8x1x20xf32> to vector<1x1x20xf32>
    %52 = vector.shape_cast %51 : vector<1x1x20xf32> to vector<1x20xf32>
    %53 = vector.broadcast %52 : vector<1x20xf32> to vector<2x20xf32>
    %54 = arith.mulf %50, %53 : vector<2x20xf32>
    %55 = arith.addf %33, %54 : vector<2x20xf32>
    %56 = vector.extract_strided_slice %8 {offsets = [4, 0], sizes = [2, 128], strides = [1, 1]} : vector<16x128xf32> to vector<2x128xf32>
    %cst_21 = arith.constant dense<0.000000e+00> : vector<2x128xf32>
    %57 = tpu.matmul %50, %0, %cst_21 {dimension_numbers = #tpu.dot_dimension_numbers<[1], [0], [0], [1], [0, 0, 1, 1], [], []>} : vector<2x20xf32>, vector<20x128xf32>, vector<2x128xf32> -> vector<2x128xf32>
    %58 = arith.addf %56, %57 : vector<2x128xf32>
    %59 = math.tanh %58 : vector<2x128xf32>
    %cst_22 = arith.constant 1.000000e+00 : f32
    %60 = vector.broadcast %cst_22 : f32 to vector<2x128xf32>
    %61 = arith.addf %59, %60 : vector<2x128xf32>
    %cst_23 = arith.constant 5.000000e-01 : f32
    %62 = vector.broadcast %cst_23 : f32 to vector<2x128xf32>
    %63 = arith.mulf %62, %61 : vector<2x128xf32>
    %64 = vector.extract_strided_slice %63 {offsets = [0, 0], sizes = [2, 20], strides = [1, 1]} : vector<2x128xf32> to vector<2x20xf32>
    %65 = vector.extract_strided_slice %63 {offsets = [0, 32], sizes = [2, 20], strides = [1, 1]} : vector<2x128xf32> to vector<2x20xf32>
    %66 = vector.extract_strided_slice %59 {offsets = [0, 64], sizes = [2, 20], strides = [1, 1]} : vector<2x128xf32> to vector<2x20xf32>
    %67 = vector.extract_strided_slice %63 {offsets = [0, 96], sizes = [2, 20], strides = [1, 1]} : vector<2x128xf32> to vector<2x20xf32>
    %68 = arith.mulf %65, %48 : vector<2x20xf32>
    %69 = arith.mulf %64, %66 : vector<2x20xf32>
    %70 = arith.addf %68, %69 : vector<2x20xf32>
    %71 = math.tanh %70 : vector<2x20xf32>
    %72 = arith.mulf %67, %71 : vector<2x20xf32>
    %73 = vector.extract_strided_slice %1 {offsets = [2, 0, 0], sizes = [1, 1, 20], strides = [1, 1, 1]} : vector<8x1x20xf32> to vector<1x1x20xf32>
    %74 = vector.shape_cast %73 : vector<1x1x20xf32> to vector<1x20xf32>
    %75 = vector.broadcast %74 : vector<1x20xf32> to vector<2x20xf32>
    %76 = arith.mulf %72, %75 : vector<2x20xf32>
    %77 = arith.addf %55, %76 : vector<2x20xf32>
    %78 = vector.extract_strided_slice %8 {offsets = [6, 0], sizes = [2, 128], strides = [1, 1]} : vector<16x128xf32> to vector<2x128xf32>
    %cst_24 = arith.constant dense<0.000000e+00> : vector<2x128xf32>
    %79 = tpu.matmul %72, %0, %cst_24 {dimension_numbers = #tpu.dot_dimension_numbers<[1], [0], [0], [1], [0, 0, 1, 1], [], []>} : vector<2x20xf32>, vector<20x128xf32>, vector<2x128xf32> -> vector<2x128xf32>
    %80 = arith.addf %78, %79 : vector<2x128xf32>
    %81 = math.tanh %80 : vector<2x128xf32>
    %cst_25 = arith.constant 1.000000e+00 : f32
    %82 = vector.broadcast %cst_25 : f32 to vector<2x128xf32>
    %83 = arith.addf %81, %82 : vector<2x128xf32>
    %cst_26 = arith.constant 5.000000e-01 : f32
    %84 = vector.broadcast %cst_26 : f32 to vector<2x128xf32>
    %85 = arith.mulf %84, %83 : vector<2x128xf32>
    %86 = vector.extract_strided_slice %85 {offsets = [0, 0], sizes = [2, 20], strides = [1, 1]} : vector<2x128xf32> to vector<2x20xf32>
    %87 = vector.extract_strided_slice %85 {offsets = [0, 32], sizes = [2, 20], strides = [1, 1]} : vector<2x128xf32> to vector<2x20xf32>
    %88 = vector.extract_strided_slice %81 {offsets = [0, 64], sizes = [2, 20], strides = [1, 1]} : vector<2x128xf32> to vector<2x20xf32>
    %89 = vector.extract_strided_slice %85 {offsets = [0, 96], sizes = [2, 20], strides = [1, 1]} : vector<2x128xf32> to vector<2x20xf32>
    %90 = arith.mulf %87, %70 : vector<2x20xf32>
    %91 = arith.mulf %86, %88 : vector<2x20xf32>
    %92 = arith.addf %90, %91 : vector<2x20xf32>
    %93 = math.tanh %92 : vector<2x20xf32>
    %94 = arith.mulf %89, %93 : vector<2x20xf32>
    %95 = vector.extract_strided_slice %1 {offsets = [3, 0, 0], sizes = [1, 1, 20], strides = [1, 1, 1]} : vector<8x1x20xf32> to vector<1x1x20xf32>
    %96 = vector.shape_cast %95 : vector<1x1x20xf32> to vector<1x20xf32>
    %97 = vector.broadcast %96 : vector<1x20xf32> to vector<2x20xf32>
    %98 = arith.mulf %94, %97 : vector<2x20xf32>
    %99 = arith.addf %77, %98 : vector<2x20xf32>
    %100 = vector.extract_strided_slice %8 {offsets = [8, 0], sizes = [2, 128], strides = [1, 1]} : vector<16x128xf32> to vector<2x128xf32>
    %cst_27 = arith.constant dense<0.000000e+00> : vector<2x128xf32>
    %101 = tpu.matmul %94, %0, %cst_27 {dimension_numbers = #tpu.dot_dimension_numbers<[1], [0], [0], [1], [0, 0, 1, 1], [], []>} : vector<2x20xf32>, vector<20x128xf32>, vector<2x128xf32> -> vector<2x128xf32>
    %102 = arith.addf %100, %101 : vector<2x128xf32>
    %103 = math.tanh %102 : vector<2x128xf32>
    %cst_28 = arith.constant 1.000000e+00 : f32
    %104 = vector.broadcast %cst_28 : f32 to vector<2x128xf32>
    %105 = arith.addf %103, %104 : vector<2x128xf32>
    %cst_29 = arith.constant 5.000000e-01 : f32
    %106 = vector.broadcast %cst_29 : f32 to vector<2x128xf32>
    %107 = arith.mulf %106, %105 : vector<2x128xf32>
    %108 = vector.extract_strided_slice %107 {offsets = [0, 0], sizes = [2, 20], strides = [1, 1]} : vector<2x128xf32> to vector<2x20xf32>
    %109 = vector.extract_strided_slice %107 {offsets = [0, 32], sizes = [2, 20], strides = [1, 1]} : vector<2x128xf32> to vector<2x20xf32>
    %110 = vector.extract_strided_slice %103 {offsets = [0, 64], sizes = [2, 20], strides = [1, 1]} : vector<2x128xf32> to vector<2x20xf32>
    %111 = vector.extract_strided_slice %107 {offsets = [0, 96], sizes = [2, 20], strides = [1, 1]} : vector<2x128xf32> to vector<2x20xf32>
    %112 = arith.mulf %109, %92 : vector<2x20xf32>
    %113 = arith.mulf %108, %110 : vector<2x20xf32>
    %114 = arith.addf %112, %113 : vector<2x20xf32>
    %115 = math.tanh %114 : vector<2x20xf32>
    %116 = arith.mulf %111, %115 : vector<2x20xf32>
    %117 = vector.extract_strided_slice %1 {offsets = [4, 0, 0], sizes = [1, 1, 20], strides = [1, 1, 1]} : vector<8x1x20xf32> to vector<1x1x20xf32>
    %118 = vector.shape_cast %117 : vector<1x1x20xf32> to vector<1x20xf32>
    %119 = vector.broadcast %118 : vector<1x20xf32> to vector<2x20xf32>
    %120 = arith.mulf %116, %119 : vector<2x20xf32>
    %121 = arith.addf %99, %120 : vector<2x20xf32>
    %122 = vector.extract_strided_slice %8 {offsets = [10, 0], sizes = [2, 128], strides = [1, 1]} : vector<16x128xf32> to vector<2x128xf32>
    %cst_30 = arith.constant dense<0.000000e+00> : vector<2x128xf32>
    %123 = tpu.matmul %116, %0, %cst_30 {dimension_numbers = #tpu.dot_dimension_numbers<[1], [0], [0], [1], [0, 0, 1, 1], [], []>} : vector<2x20xf32>, vector<20x128xf32>, vector<2x128xf32> -> vector<2x128xf32>
    %124 = arith.addf %122, %123 : vector<2x128xf32>
    %125 = math.tanh %124 : vector<2x128xf32>
    %cst_31 = arith.constant 1.000000e+00 : f32
    %126 = vector.broadcast %cst_31 : f32 to vector<2x128xf32>
    %127 = arith.addf %125, %126 : vector<2x128xf32>
    %cst_32 = arith.constant 5.000000e-01 : f32
    %128 = vector.broadcast %cst_32 : f32 to vector<2x128xf32>
    %129 = arith.mulf %128, %127 : vector<2x128xf32>
    %130 = vector.extract_strided_slice %129 {offsets = [0, 0], sizes = [2, 20], strides = [1, 1]} : vector<2x128xf32> to vector<2x20xf32>
    %131 = vector.extract_strided_slice %129 {offsets = [0, 32], sizes = [2, 20], strides = [1, 1]} : vector<2x128xf32> to vector<2x20xf32>
    %132 = vector.extract_strided_slice %125 {offsets = [0, 64], sizes = [2, 20], strides = [1, 1]} : vector<2x128xf32> to vector<2x20xf32>
    %133 = vector.extract_strided_slice %129 {offsets = [0, 96], sizes = [2, 20], strides = [1, 1]} : vector<2x128xf32> to vector<2x20xf32>
    %134 = arith.mulf %131, %114 : vector<2x20xf32>
    %135 = arith.mulf %130, %132 : vector<2x20xf32>
    %136 = arith.addf %134, %135 : vector<2x20xf32>
    %137 = math.tanh %136 : vector<2x20xf32>
    %138 = arith.mulf %133, %137 : vector<2x20xf32>
    %139 = vector.extract_strided_slice %1 {offsets = [5, 0, 0], sizes = [1, 1, 20], strides = [1, 1, 1]} : vector<8x1x20xf32> to vector<1x1x20xf32>
    %140 = vector.shape_cast %139 : vector<1x1x20xf32> to vector<1x20xf32>
    %141 = vector.broadcast %140 : vector<1x20xf32> to vector<2x20xf32>
    %142 = arith.mulf %138, %141 : vector<2x20xf32>
    %143 = arith.addf %121, %142 : vector<2x20xf32>
    %144 = vector.extract_strided_slice %8 {offsets = [12, 0], sizes = [2, 128], strides = [1, 1]} : vector<16x128xf32> to vector<2x128xf32>
    %cst_33 = arith.constant dense<0.000000e+00> : vector<2x128xf32>
    %145 = tpu.matmul %138, %0, %cst_33 {dimension_numbers = #tpu.dot_dimension_numbers<[1], [0], [0], [1], [0, 0, 1, 1], [], []>} : vector<2x20xf32>, vector<20x128xf32>, vector<2x128xf32> -> vector<2x128xf32>
    %146 = arith.addf %144, %145 : vector<2x128xf32>
    %147 = math.tanh %146 : vector<2x128xf32>
    %cst_34 = arith.constant 1.000000e+00 : f32
    %148 = vector.broadcast %cst_34 : f32 to vector<2x128xf32>
    %149 = arith.addf %147, %148 : vector<2x128xf32>
    %cst_35 = arith.constant 5.000000e-01 : f32
    %150 = vector.broadcast %cst_35 : f32 to vector<2x128xf32>
    %151 = arith.mulf %150, %149 : vector<2x128xf32>
    %152 = vector.extract_strided_slice %151 {offsets = [0, 0], sizes = [2, 20], strides = [1, 1]} : vector<2x128xf32> to vector<2x20xf32>
    %153 = vector.extract_strided_slice %151 {offsets = [0, 32], sizes = [2, 20], strides = [1, 1]} : vector<2x128xf32> to vector<2x20xf32>
    %154 = vector.extract_strided_slice %147 {offsets = [0, 64], sizes = [2, 20], strides = [1, 1]} : vector<2x128xf32> to vector<2x20xf32>
    %155 = vector.extract_strided_slice %151 {offsets = [0, 96], sizes = [2, 20], strides = [1, 1]} : vector<2x128xf32> to vector<2x20xf32>
    %156 = arith.mulf %153, %136 : vector<2x20xf32>
    %157 = arith.mulf %152, %154 : vector<2x20xf32>
    %158 = arith.addf %156, %157 : vector<2x20xf32>
    %159 = math.tanh %158 : vector<2x20xf32>
    %160 = arith.mulf %155, %159 : vector<2x20xf32>
    %161 = vector.extract_strided_slice %1 {offsets = [6, 0, 0], sizes = [1, 1, 20], strides = [1, 1, 1]} : vector<8x1x20xf32> to vector<1x1x20xf32>
    %162 = vector.shape_cast %161 : vector<1x1x20xf32> to vector<1x20xf32>
    %163 = vector.broadcast %162 : vector<1x20xf32> to vector<2x20xf32>
    %164 = arith.mulf %160, %163 : vector<2x20xf32>
    %165 = arith.addf %143, %164 : vector<2x20xf32>
    %166 = vector.extract_strided_slice %8 {offsets = [14, 0], sizes = [2, 128], strides = [1, 1]} : vector<16x128xf32> to vector<2x128xf32>
    %cst_36 = arith.constant dense<0.000000e+00> : vector<2x128xf32>
    %167 = tpu.matmul %160, %0, %cst_36 {dimension_numbers = #tpu.dot_dimension_numbers<[1], [0], [0], [1], [0, 0, 1, 1], [], []>} : vector<2x20xf32>, vector<20x128xf32>, vector<2x128xf32> -> vector<2x128xf32>
    %168 = arith.addf %166, %167 : vector<2x128xf32>
    %169 = math.tanh %168 : vector<2x128xf32>
    %cst_37 = arith.constant 1.000000e+00 : f32
    %170 = vector.broadcast %cst_37 : f32 to vector<2x128xf32>
    %171 = arith.addf %169, %170 : vector<2x128xf32>
    %cst_38 = arith.constant 5.000000e-01 : f32
    %172 = vector.broadcast %cst_38 : f32 to vector<2x128xf32>
    %173 = arith.mulf %172, %171 : vector<2x128xf32>
    %174 = vector.extract_strided_slice %173 {offsets = [0, 0], sizes = [2, 20], strides = [1, 1]} : vector<2x128xf32> to vector<2x20xf32>
    %175 = vector.extract_strided_slice %173 {offsets = [0, 32], sizes = [2, 20], strides = [1, 1]} : vector<2x128xf32> to vector<2x20xf32>
    %176 = vector.extract_strided_slice %169 {offsets = [0, 64], sizes = [2, 20], strides = [1, 1]} : vector<2x128xf32> to vector<2x20xf32>
    %177 = vector.extract_strided_slice %173 {offsets = [0, 96], sizes = [2, 20], strides = [1, 1]} : vector<2x128xf32> to vector<2x20xf32>
    %178 = arith.mulf %175, %158 : vector<2x20xf32>
    %179 = arith.mulf %174, %176 : vector<2x20xf32>
    %180 = arith.addf %178, %179 : vector<2x20xf32>
    %181 = math.tanh %180 : vector<2x20xf32>
    %182 = arith.mulf %177, %181 : vector<2x20xf32>
    %183 = vector.extract_strided_slice %1 {offsets = [7, 0, 0], sizes = [1, 1, 20], strides = [1, 1, 1]} : vector<8x1x20xf32> to vector<1x1x20xf32>
    %184 = vector.shape_cast %183 : vector<1x1x20xf32> to vector<1x20xf32>
    %185 = vector.broadcast %184 : vector<1x20xf32> to vector<2x20xf32>
    %186 = arith.mulf %182, %185 : vector<2x20xf32>
    %187 = arith.addf %165, %186 : vector<2x20xf32>
    %cst_39 = arith.constant dense<0.000000e+00> : vector<2xf32>
    %188 = vector.multi_reduction <add>, %187, %cst_39 [1] : vector<2x20xf32> to vector<2xf32>
    %189 = vector.shape_cast %188 : vector<2xf32> to vector<2x1xf32>
    %190 = vector.broadcast %2 : vector<1x1xf32> to vector<2x1xf32>
    %191 = arith.addf %189, %190 : vector<2x1xf32>
    %c0_40 = arith.constant 0 : index
    %c0_41 = arith.constant 0 : index
    %192 = vector.load %arg6[%c0_40, %c0_41] : memref<2x1xf32, #tpu.memory_space<vmem>>, vector<2x1xf32>
    tpu.vector_store %arg6[%c0_40, %c0_41], %191 {strides = array<i32>} : memref<2x1xf32, #tpu.memory_space<vmem>>, vector<2x1xf32>,
    return
  }
}

</mosaic_0001>

<llo_original>
// kernel: tpu_custom_call.1
$region0: #{tpu_custom_call.1}
  #allocation0 [shape = 'u32[]', space=smem, size = 0x4, offset = 0x4, fixed_abs, tag = 'smem constant byte address 0x4 - core index']
  #allocation1 [shape = 'u32[144,128]{1,0:T(1,128)}', space=vmem, size = 0x12000, scoped, tag = 'internal scratch']
  #allocation2 [shape = 'f32[1,1]{1,0:T(1,128)S(1)}', space=vmem, size = 0x200, scoped, tag = 'scoped memory for tpu_custom_call.1']
  %s0 = inlined_call_operand.vmem [shape: f32[16,3], index: 0, kind: input, shape index: {}]
  %s1 = inlined_call_operand.hbm [shape: f32[3,128], index: 1, kind: input, shape index: {}]
  %s2 = inlined_call_operand.vmem [shape: f32[20,128], index: 2, kind: input, shape index: {}]
  %s3 = inlined_call_operand.vmem [shape: f32[1,128], index: 3, kind: input, shape index: {}]
  %s4 = inlined_call_operand.vmem [shape: f32[8,1,20], index: 4, kind: input, shape index: {}]
  %s5 = inlined_call_operand.<no memory space> [shape: f32[1,1], index: 5, kind: input, shape index: {}]
  %s6 = inlined_call_operand.vmem [shape: f32[2,1], index: 6, kind: output, shape index: {}]
  %s7 = sld [smem:[#allocation0]]
  $region38: #{tpu_custom_call.1} parent=0
    _
  %s9 = ssub.s32 1, %s7
  %s10 = scalar_select 0, %s9, %s7
  %v11 = vstv %s5
  %12 = vst [vmem:[#allocation2] sm:$0x1] %v11
  $region1: #{tpu_custom_call.1} parent=0
    #allocation3 [shape = 'u8[2048]{0}', space=vmem, size = 0x800, scoped, tag = 'input window, operand 1, single buffered']
    #allocation4 [shape = 's32[1]{0}', space=sflag, size = 0x4, scoped, tag = 'scoped memory for tpu_custom_call.1']
    %13 = vsyncpa [#allocation4], 0
    // Predicated region
    $region2: #{tpu_custom_call.1} parent=1 // pred_check
      _
    $region3: #{tpu_custom_call.1} parent=1 // pred_check_branch
      %15 = sbr.rel (0) target = $region5
    $region4: #{tpu_custom_call.1} parent=1 // pred_region
      _
    $region5: #{tpu_custom_call.1} parent=1 // pred_fallthru
      _
    // Predicated region
    $region6: #{tpu_custom_call.1} parent=1 // pred_check
      _
    $region7: #{tpu_custom_call.1} parent=1 // pred_check_branch
      %17 = sbr.rel (0) target = $region9
    $region8: #{tpu_custom_call.1} parent=1 // pred_region
      %s19 = ssub.s32 64, 64
      %20 = vsyncadd [#allocation4], %s19
      %s22 = sshll.u32 [#allocation3], 4
      %s23 = int_to_ptr.vmem [resolvable:$true] %s22
      %25 = dma.hbm_to_vmem [thread:$0]  %s1, 64, %s23, [#allocation4]
    $region9: #{tpu_custom_call.1} parent=1 // pred_fallthru
      _
    // Predicated region
    $region10: #{tpu_custom_call.1} parent=1 // pred_check
      _
    $region11: #{tpu_custom_call.1} parent=1 // pred_check_branch
      %27 = sbr.rel (0) target = $region13
    $region12: #{tpu_custom_call.1} parent=1 // pred_region
      _
    $region13: #{tpu_custom_call.1} parent=1 // pred_fallthru
      _
    // Predicated region
    $region14: #{tpu_custom_call.1} parent=1 // pred_check
      _
    $region15: #{tpu_custom_call.1} parent=1 // pred_check_branch
      %29 = sbr.rel (0) target = $region17
    $region16: #{tpu_custom_call.1} parent=1 // pred_region
      _
    $region17: #{tpu_custom_call.1} parent=1 // pred_fallthru
      _
    // Predicated region
    $region18: #{tpu_custom_call.1} parent=1 // pred_check
      _
    $region19: #{tpu_custom_call.1} parent=1 // pred_check_branch
      %31 = sbr.rel (0) target = $region21
    $region20: #{tpu_custom_call.1} parent=1 // pred_region
      _
    $region21: #{tpu_custom_call.1} parent=1 // pred_fallthru
      _
    // Predicated region
    $region22: #{tpu_custom_call.1} parent=1 // pred_check
      _
    $region23: #{tpu_custom_call.1} parent=1 // pred_check_branch
      %33 = sbr.rel (0) target = $region25
    $region24: #{tpu_custom_call.1} parent=1 // pred_region
      _
    $region25: #{tpu_custom_call.1} parent=1 // pred_fallthru
      _
    // Predicated region
    $region26: #{tpu_custom_call.1} parent=1 // pred_check
      _
    $region27: #{tpu_custom_call.1} parent=1 // pred_check_branch
      %35 = sbr.rel (0) target = $region29
    $region28: #{tpu_custom_call.1} parent=1 // pred_region
      %36 = dma.done [#allocation4], 64
    $region29: #{tpu_custom_call.1} parent=1 // pred_fallthru
      _
    %v37 = vld [vmem:[%s2] sm:$0xff]
    %v38 = vld [vmem:[%s2 + $0x8] sm:$0xff]
    %v39 = vld [vmem:[%s2 + $0x10] sm:$0xf]
    %v40 = vld [vmem:[%s4] sm:$0x1]
    %v41 = vld [vmem:[%s4 + $0x1] sm:$0x1]
    %v42 = vld [vmem:[%s4 + $0x2] sm:$0x1]
    %v43 = vld [vmem:[%s4 + $0x3] sm:$0x1]
    %v44 = vld [vmem:[%s4 + $0x4] sm:$0x1]
    %v45 = vld [vmem:[%s4 + $0x5] sm:$0x1]
    %v46 = vld [vmem:[%s4 + $0x6] sm:$0x1]
    %v47 = vld [vmem:[%s4 + $0x7] sm:$0x1]
    %v48 = vld [vmem:[#allocation2] sm:$0x1]
    %v49 = vld [vmem:[%s0] sm:$0xff]
    %v50 = vld [vmem:[%s0 + $0x8] sm:$0xff]
    %v51 = vld [vmem:[#allocation3] sm:$0x7]
    %v52 = vld [vmem:[%s3] sm:$0x1]
    %v54 = vlaneseq
    %v55 = vshrl.u32 %v54, 7
    %v56 = vsub.s32 0, %v55
    %v57 = vrot.slane %v52, %v56
    %vm59 = vcmask 23552
    %v61 = vsel %vm59, %v49, 0
    %v64 = vsel %vm59, %v50, 0
    %vm66 = vcmask 1042432
    %v68 = vsel %vm66, %v51, 0
    %70 = vmatprep.subr.mxu0 0.0
    %71 = vmatpush1.msra.mxu0 %v68
    %72 = vmatprep.subr.mxu0 0.0
    %73 = vmatpush1.msra.mxu0 0.0
    %74 = vmatprep.subr.mxu0 0.0
    %75 = vmatpush1.msra.mxu0 0.0
    %76 = vmatprep.subr.mxu0 0.0
    %77 = vmatpush1.msra.mxu0 0.0
    %78 = vmatprep.subr.mxu0 0.0
    %79 = vmatpush1.msra.mxu0 0.0
    %80 = vmatprep.subr.mxu0 0.0
    %81 = vmatpush1.msra.mxu0 0.0
    %82 = vmatprep.subr.mxu0 0.0
    %83 = vmatpush1.msra.mxu0 0.0
    %84 = vmatprep.subr.mxu0 0.0
    %85 = vmatpush1.msra.mxu0 0.0
    %86 = vmatprep.subr.mxu0 0.0
    %87 = vmatpush1.msra.mxu0 0.0
    %88 = vmatprep.subr.mxu0 0.0
    %89 = vmatpush1.msra.mxu0 0.0
    %90 = vmatprep.subr.mxu0 0.0
    %91 = vmatpush1.msra.mxu0 0.0
    %92 = vmatprep.subr.mxu0 0.0
    %93 = vmatpush1.msra.mxu0 0.0
    %94 = vmatprep.subr.mxu0 0.0
    %95 = vmatpush1.msra.mxu0 0.0
    %96 = vmatprep.subr.mxu0 0.0
    %97 = vmatpush1.msra.mxu0 0.0
    %98 = vmatprep.subr.mxu0 0.0
    %99 = vmatpush1.msra.mxu0 0.0
    %100 = vmatprep.subr.mxu0 0.0
    %101 = vmatpush1.msra.mxu0 0.0
    %102 = vmatprep.subr.mxu0 0.0
    %103 = vmatpush1.msra.mxu0 0.0
    %104 = vmatprep.subr.mxu0 0.0
    %105 = vmatpush1.msra.mxu0 0.0
    %106 = vmatprep.subr.mxu0 0.0
    %107 = vmatpush1.msra.mxu0 0.0
    %108 = vmatprep.subr.mxu0 0.0
    %109 = vmatpush1.msra.mxu0 0.0
    %110 = vmatprep.subr.mxu0 0.0
    %111 = vmatpush1.msra.mxu0 0.0
    %112 = vmatprep.subr.mxu0 0.0
    %113 = vmatpush1.msra.mxu0 0.0
    %114 = vmatprep.subr.mxu0 0.0
    %115 = vmatpush1.msra.mxu0 0.0
    %116 = vmatprep.subr.mxu0 0.0
    %117 = vmatpush1.msra.mxu0 0.0
    %118 = vmatprep.subr.mxu0 0.0
    %119 = vmatpush1.msra.mxu0 0.0
    %120 = vmatprep.subr.mxu0 0.0
    %121 = vmatpush1.msra.mxu0 0.0
    %122 = vmatprep.subr.mxu0 0.0
    %123 = vmatpush1.msra.mxu0 0.0
    %124 = vmatprep.subr.mxu0 0.0
    %125 = vmatpush1.msra.mxu0 0.0
    %126 = vmatprep.subr.mxu0 0.0
    %127 = vmatpush1.msra.mxu0 0.0
    %128 = vmatprep.subr.mxu0 0.0
    %129 = vmatpush1.msra.mxu0 0.0
    %130 = vmatprep.subr.mxu0 0.0
    %131 = vmatpush1.msra.mxu0 0.0
    %132 = vmatprep.subr.mxu0 0.0
    %133 = vmatpush1.msra.mxu0 0.0
    %134 = vmatprep.mubr.f32.mxu0 0.0
    %135 = vmatmul.mubr.f32.gmra.mrb[0].mxu0 %v61
    %v136 = vpop.f32.mrb[0].mxu0
    %v137 = vadd.f32 %v57, %v136
    %v138 = vpop.f32.mrb[0].mxu0
    %139 = vmatprep.mubr.f32.mxu0 0.0
    %140 = vmatmul.mubr.f32.gmra.mrb[0].mxu0 %v64
    %v141 = vpop.f32.mrb[0].mxu0
    %v142 = vadd.f32 %v57, %v141
    %v143 = vpop.f32.mrb[0].mxu0
    %144 = vdwg.mxu0
    %vm145 = vcmask 162816
    %v147 = vsel %vm145, 0.0, 0
    %vm149 = vcmask 1043456
    %v151 = vsel %vm149, %v39, 0
    %153 = vmatprep.subr.mxu0 0.0
    %154 = vmatpush1.msra.mxu0 %v37
    %155 = vmatprep.subr.mxu0 0.0
    %156 = vmatpush1.msra.mxu0 %v38
    %157 = vmatprep.subr.mxu0 0.0
    %158 = vmatpush1.msra.mxu0 %v151
    %159 = vmatprep.subr.mxu0 0.0
    %160 = vmatpush1.msra.mxu0 0.0
    %161 = vmatprep.subr.mxu0 0.0
    %162 = vmatpush1.msra.mxu0 0.0
    %163 = vmatprep.subr.mxu0 0.0
    %164 = vmatpush1.msra.mxu0 0.0
    %165 = vmatprep.subr.mxu0 0.0
    %166 = vmatpush1.msra.mxu0 0.0
    %167 = vmatprep.subr.mxu0 0.0
    %168 = vmatpush1.msra.mxu0 0.0
    %169 = vmatprep.subr.mxu0 0.0
    %170 = vmatpush1.msra.mxu0 0.0
    %171 = vmatprep.subr.mxu0 0.0
    %172 = vmatpush1.msra.mxu0 0.0
    %173 = vmatprep.subr.mxu0 0.0
    %174 = vmatpush1.msra.mxu0 0.0
    %175 = vmatprep.subr.mxu0 0.0
    %176 = vmatpush1.msra.mxu0 0.0
    %177 = vmatprep.subr.mxu0 0.0
    %178 = vmatpush1.msra.mxu0 0.0
    %179 = vmatprep.subr.mxu0 0.0
    %180 = vmatpush1.msra.mxu0 0.0
    %181 = vmatprep.subr.mxu0 0.0
    %182 = vmatpush1.msra.mxu0 0.0
    %183 = vmatprep.subr.mxu0 0.0
    %184 = vmatpush1.msra.mxu0 0.0
    %185 = vmatprep.subr.mxu0 0.0
    %186 = vmatpush1.msra.mxu0 0.0
    %187 = vmatprep.subr.mxu0 0.0
    %188 = vmatpush1.msra.mxu0 0.0
    %189 = vmatprep.subr.mxu0 0.0
    %190 = vmatpush1.msra.mxu0 0.0
    %191 = vmatprep.subr.mxu0 0.0
    %192 = vmatpush1.msra.mxu0 0.0
    %193 = vmatprep.subr.mxu0 0.0
    %194 = vmatpush1.msra.mxu0 0.0
    %195 = vmatprep.subr.mxu0 0.0
    %196 = vmatpush1.msra.mxu0 0.0
    %197 = vmatprep.subr.mxu0 0.0
    %198 = vmatpush1.msra.mxu0 0.0
    %199 = vmatprep.subr.mxu0 0.0
    %200 = vmatpush1.msra.mxu0 0.0
    %201 = vmatprep.subr.mxu0 0.0
    %202 = vmatpush1.msra.mxu0 0.0
    %203 = vmatprep.subr.mxu0 0.0
    %204 = vmatpush1.msra.mxu0 0.0
    %205 = vmatprep.subr.mxu0 0.0
    %206 = vmatpush1.msra.mxu0 0.0
    %207 = vmatprep.subr.mxu0 0.0
    %208 = vmatpush1.msra.mxu0 0.0
    %209 = vmatprep.subr.mxu0 0.0
    %210 = vmatpush1.msra.mxu0 0.0
    %211 = vmatprep.subr.mxu0 0.0
    %212 = vmatpush1.msra.mxu0 0.0
    %213 = vmatprep.subr.mxu0 0.0
    %214 = vmatpush1.msra.mxu0 0.0
    %215 = vmatprep.subr.mxu0 0.0
    %216 = vmatpush1.msra.mxu0 0.0
    %217 = vmatprep.mubr.f32.mxu0 0.0
    %218 = vmatmul.mubr.f32.gmra.mrb[0].mxu0 %v147
    %v219 = vpop.f32.mrb[0].mxu0
    %v220 = vadd.f32 0.0, %v219
    %v221 = vpop.f32.mrb[0].mxu0
    %222 = vdwg.mxu0
    %v223 = vadd.f32 %v137, %v220
    %v224 = vtanh.pop %v223
    %v225 = vadd.f32 %v224, 1.0
    %v226 = vmul.f32 %v225, 0.5
    %v227 = vmul.f32 %v226, 0.0
    %229 = vrot.lane.b32.xlu0 %v224, 64
    %v230 = vpop.permute.xlu0 %229
    %v232 = vmul.f32 %v226, %v230
    %234 = vrot.lane.b32.xlu0 %v232, 32
    %v235 = vpop.permute.xlu0 %234
    %v237 = vadd.f32 %v227, %v235
    %v238 = vtanh.pop %v237
    %240 = vrot.lane.b32.xlu0 %v238, 64
    %v241 = vpop.permute.xlu0 %240
    %v243 = vmul.f32 %v226, %v241
    %v245 = vlaneseq
    %v246 = vshrl.u32 %v245, 7
    %v247 = vsub.s32 0, %v246
    %v248 = vrot.slane %v40, %v247
    %249 = vrot.lane.b32.xlu0 %v248, 96
    %v250 = vpop.permute.xlu0 %249
    %v252 = vmul.f32 %v243, %v250
    %v253 = vadd.f32 %v252, 0.0
    %255 = vrot.lane.b32.xlu0 %v243, 32
    %v256 = vpop.permute.xlu0 %255
    %v257 = vsel %vm145, %v256, 0
    %259 = vmatprep.subr.mxu0 0.0
    %260 = vmatpush1.msra.mxu0 %v37
    %261 = vmatprep.subr.mxu0 0.0
    %262 = vmatpush1.msra.mxu0 %v38
    %263 = vmatprep.subr.mxu0 0.0
    %264 = vmatpush1.msra.mxu0 %v151
    %265 = vmatprep.subr.mxu0 0.0
    %266 = vmatpush1.msra.mxu0 0.0
    %267 = vmatprep.subr.mxu0 0.0
    %268 = vmatpush1.msra.mxu0 0.0
    %269 = vmatprep.subr.mxu0 0.0
    %270 = vmatpush1.msra.mxu0 0.0
    %271 = vmatprep.subr.mxu0 0.0
    %272 = vmatpush1.msra.mxu0 0.0
    %273 = vmatprep.subr.mxu0 0.0
    %274 = vmatpush1.msra.mxu0 0.0
    %275 = vmatprep.subr.mxu0 0.0
    %276 = vmatpush1.msra.mxu0 0.0
    %277 = vmatprep.subr.mxu0 0.0
    %278 = vmatpush1.msra.mxu0 0.0
    %279 = vmatprep.subr.mxu0 0.0
    %280 = vmatpush1.msra.mxu0 0.0
    %281 = vmatprep.subr.mxu0 0.0
    %282 = vmatpush1.msra.mxu0 0.0
    %283 = vmatprep.subr.mxu0 0.0
    %284 = vmatpush1.msra.mxu0 0.0
    %285 = vmatprep.subr.mxu0 0.0
    %286 = vmatpush1.msra.mxu0 0.0
    %287 = vmatprep.subr.mxu0 0.0
    %288 = vmatpush1.msra.mxu0 0.0
    %289 = vmatprep.subr.mxu0 0.0
    %290 = vmatpush1.msra.mxu0 0.0
    %291 = vmatprep.subr.mxu0 0.0
    %292 = vmatpush1.msra.mxu0 0.0
    %293 = vmatprep.subr.mxu0 0.0
    %294 = vmatpush1.msra.mxu0 0.0
    %295 = vmatprep.subr.mxu0 0.0
    %296 = vmatpush1.msra.mxu0 0.0
    %297 = vmatprep.subr.mxu0 0.0
    %298 = vmatpush1.msra.mxu0 0.0
    %299 = vmatprep.subr.mxu0 0.0
    %300 = vmatpush1.msra.mxu0 0.0
    %301 = vmatprep.subr.mxu0 0.0
    %302 = vmatpush1.msra.mxu0 0.0
    %303 = vmatprep.subr.mxu0 0.0
    %304 = vmatpush1.msra.mxu0 0.0
    %305 = vmatprep.subr.mxu0 0.0
    %306 = vmatpush1.msra.mxu0 0.0
    %307 = vmatprep.subr.mxu0 0.0
    %308 = vmatpush1.msra.mxu0 0.0
    %309 = vmatprep.subr.mxu0 0.0
    %310 = vmatpush1.msra.mxu0 0.0
    %311 = vmatprep.subr.mxu0 0.0
    %312 = vmatpush1.msra.mxu0 0.0
    %313 = vmatprep.subr.mxu0 0.0
    %314 = vmatpush1.msra.mxu0 0.0
    %315 = vmatprep.subr.mxu0 0.0
    %316 = vmatpush1.msra.mxu0 0.0
    %317 = vmatprep.subr.mxu0 0.0
    %318 = vmatpush1.msra.mxu0 0.0
    %319 = vmatprep.subr.mxu0 0.0
    %320 = vmatpush1.msra.mxu0 0.0
    %321 = vmatprep.subr.mxu0 0.0
    %322 = vmatpush1.msra.mxu0 0.0
    %323 = vmatprep.mubr.f32.mxu0 0.0
    %324 = vmatmul.mubr.f32.gmra.mrb[0].mxu0 %v257
    %v325 = vpop.f32.mrb[0].mxu0
    %v326 = vadd.f32 0.0, %v325
    %v327 = vpop.f32.mrb[0].mxu0
    %328 = vdwg.mxu0
    %v330 = vrot.slane %v326, 6
    %v332 = vadd.f32 %v137, %v330
    %v333 = vtanh.pop %v332
    %v334 = vadd.f32 %v333, 1.0
    %v335 = vmul.f32 %v334, 0.5
    %v337 = vrot.slane %v237, 6
    %v339 = vmul.f32 %v335, %v337
    %341 = vrot.lane.b32.xlu0 %v333, 64
    %v342 = vpop.permute.xlu0 %341
    %v344 = vmul.f32 %v335, %v342
    %346 = vrot.lane.b32.xlu0 %v344, 32
    %v347 = vpop.permute.xlu0 %346
    %v349 = vadd.f32 %v339, %v347
    %v350 = vtanh.pop %v349
    %352 = vrot.lane.b32.xlu0 %v350, 64
    %v353 = vpop.permute.xlu0 %352
    %v355 = vmul.f32 %v335, %v353
    %v357 = vlaneseq
    %v358 = vshrl.u32 %v357, 7
    %v359 = vsub.s32 0, %v358
    %v360 = vrot.slane %v41, %v359
    %361 = vrot.lane.b32.xlu0 %v360, 96
    %v362 = vpop.permute.xlu0 %361
    %v364 = vmul.f32 %v355, %v362
    %v366 = vrot.slane %v364, 2
    %v368 = vadd.f32 %v253, %v366
    %v370 = vrot.slane %v355, 2
    %371 = vrot.lane.b32.xlu0 %v370, 32
    %v372 = vpop.permute.xlu0 %371
    %v373 = vsel %vm145, %v372, 0
    %375 = vmatprep.subr.mxu0 0.0
    %376 = vmatpush1.msra.mxu0 %v37
    %377 = vmatprep.subr.mxu0 0.0
    %378 = vmatpush1.msra.mxu0 %v38
    %379 = vmatprep.subr.mxu0 0.0
    %380 = vmatpush1.msra.mxu0 %v151
    %381 = vmatprep.subr.mxu0 0.0
    %382 = vmatpush1.msra.mxu0 0.0
    %383 = vmatprep.subr.mxu0 0.0
    %384 = vmatpush1.msra.mxu0 0.0
    %385 = vmatprep.subr.mxu0 0.0
    %386 = vmatpush1.msra.mxu0 0.0
    %387 = vmatprep.subr.mxu0 0.0
    %388 = vmatpush1.msra.mxu0 0.0
    %389 = vmatprep.subr.mxu0 0.0
    %390 = vmatpush1.msra.mxu0 0.0
    %391 = vmatprep.subr.mxu0 0.0
    %392 = vmatpush1.msra.mxu0 0.0
    %393 = vmatprep.subr.mxu0 0.0
    %394 = vmatpush1.msra.mxu0 0.0
    %395 = vmatprep.subr.mxu0 0.0
    %396 = vmatpush1.msra.mxu0 0.0
    %397 = vmatprep.subr.mxu0 0.0
    %398 = vmatpush1.msra.mxu0 0.0
    %399 = vmatprep.subr.mxu0 0.0
    %400 = vmatpush1.msra.mxu0 0.0
    %401 = vmatprep.subr.mxu0 0.0
    %402 = vmatpush1.msra.mxu0 0.0
    %403 = vmatprep.subr.mxu0 0.0
    %404 = vmatpush1.msra.mxu0 0.0
    %405 = vmatprep.subr.mxu0 0.0
    %406 = vmatpush1.msra.mxu0 0.0
    %407 = vmatprep.subr.mxu0 0.0
    %408 = vmatpush1.msra.mxu0 0.0
    %409 = vmatprep.subr.mxu0 0.0
    %410 = vmatpush1.msra.mxu0 0.0
    %411 = vmatprep.subr.mxu0 0.0
    %412 = vmatpush1.msra.mxu0 0.0
    %413 = vmatprep.subr.mxu0 0.0
    %414 = vmatpush1.msra.mxu0 0.0
    %415 = vmatprep.subr.mxu0 0.0
    %416 = vmatpush1.msra.mxu0 0.0
    %417 = vmatprep.subr.mxu0 0.0
    %418 = vmatpush1.msra.mxu0 0.0
    %419 = vmatprep.subr.mxu0 0.0
    %420 = vmatpush1.msra.mxu0 0.0
    %421 = vmatprep.subr.mxu0 0.0
    %422 = vmatpush1.msra.mxu0 0.0
    %423 = vmatprep.subr.mxu0 0.0
    %424 = vmatpush1.msra.mxu0 0.0
    %425 = vmatprep.subr.mxu0 0.0
    %426 = vmatpush1.msra.mxu0 0.0
    %427 = vmatprep.subr.mxu0 0.0
    %428 = vmatpush1.msra.mxu0 0.0
    %429 = vmatprep.subr.mxu0 0.0
    %430 = vmatpush1.msra.mxu0 0.0
    %431 = vmatprep.subr.mxu0 0.0
    %432 = vmatpush1.msra.mxu0 0.0
    %433 = vmatprep.subr.mxu0 0.0
    %434 = vmatpush1.msra.mxu0 0.0
    %435 = vmatprep.subr.mxu0 0.0
    %436 = vmatpush1.msra.mxu0 0.0
    %437 = vmatprep.subr.mxu0 0.0
    %438 = vmatpush1.msra.mxu0 0.0
    %439 = vmatprep.mubr.f32.mxu0 0.0
    %440 = vmatmul.mubr.f32.gmra.mrb[0].mxu0 %v373
    %v441 = vpop.f32.mrb[0].mxu0
    %v442 = vadd.f32 0.0, %v441
    %v443 = vpop.f32.mrb[0].mxu0
    %444 = vdwg.mxu0
    %v446 = vrot.slane %v442, 4
    %v448 = vadd.f32 %v137, %v446
    %v449 = vtanh.pop %v448
    %v450 = vadd.f32 %v449, 1.0
    %v451 = vmul.f32 %v450, 0.5
    %v453 = vrot.slane %v349, 6
    %v455 = vmul.f32 %v451, %v453
    %457 = vrot.lane.b32.xlu0 %v449, 64
    %v458 = vpop.permute.xlu0 %457
    %v460 = vmul.f32 %v451, %v458
    %462 = vrot.lane.b32.xlu0 %v460, 32
    %v463 = vpop.permute.xlu0 %462
    %v465 = vadd.f32 %v455, %v463
    %v466 = vtanh.pop %v465
    %468 = vrot.lane.b32.xlu0 %v466, 64
    %v469 = vpop.permute.xlu0 %468
    %v471 = vmul.f32 %v451, %v469
    %v473 = vlaneseq
    %v474 = vshrl.u32 %v473, 7
    %v475 = vsub.s32 0, %v474
    %v476 = vrot.slane %v42, %v475
    %477 = vrot.lane.b32.xlu0 %v476, 96
    %v478 = vpop.permute.xlu0 %477
    %v480 = vmul.f32 %v471, %v478
    %v482 = vrot.slane %v480, 4
    %v484 = vadd.f32 %v368, %v482
    %v486 = vrot.slane %v471, 4
    %487 = vrot.lane.b32.xlu0 %v486, 32
    %v488 = vpop.permute.xlu0 %487
    %v489 = vsel %vm145, %v488, 0
    %491 = vmatprep.subr.mxu0 0.0
    %492 = vmatpush1.msra.mxu0 %v37
    %493 = vmatprep.subr.mxu0 0.0
    %494 = vmatpush1.msra.mxu0 %v38
    %495 = vmatprep.subr.mxu0 0.0
    %496 = vmatpush1.msra.mxu0 %v151
    %497 = vmatprep.subr.mxu0 0.0
    %498 = vmatpush1.msra.mxu0 0.0
    %499 = vmatprep.subr.mxu0 0.0
    %500 = vmatpush1.msra.mxu0 0.0
    %501 = vmatprep.subr.mxu0 0.0
    %502 = vmatpush1.msra.mxu0 0.0
    %503 = vmatprep.subr.mxu0 0.0
    %504 = vmatpush1.msra.mxu0 0.0
    %505 = vmatprep.subr.mxu0 0.0
    %506 = vmatpush1.msra.mxu0 0.0
    %507 = vmatprep.subr.mxu0 0.0
    %508 = vmatpush1.msra.mxu0 0.0
    %509 = vmatprep.subr.mxu0 0.0
    %510 = vmatpush1.msra.mxu0 0.0
    %511 = vmatprep.subr.mxu0 0.0
    %512 = vmatpush1.msra.mxu0 0.0
    %513 = vmatprep.subr.mxu0 0.0
    %514 = vmatpush1.msra.mxu0 0.0
    %515 = vmatprep.subr.mxu0 0.0
    %516 = vmatpush1.msra.mxu0 0.0
    %517 = vmatprep.subr.mxu0 0.0
    %518 = vmatpush1.msra.mxu0 0.0
    %519 = vmatprep.subr.mxu0 0.0
    %520 = vmatpush1.msra.mxu0 0.0
    %521 = vmatprep.subr.mxu0 0.0
    %522 = vmatpush1.msra.mxu0 0.0
    %523 = vmatprep.subr.mxu0 0.0
    %524 = vmatpush1.msra.mxu0 0.0
    %525 = vmatprep.subr.mxu0 0.0
    %526 = vmatpush1.msra.mxu0 0.0
    %527 = vmatprep.subr.mxu0 0.0
    %528 = vmatpush1.msra.mxu0 0.0
    %529 = vmatprep.subr.mxu0 0.0
    %530 = vmatpush1.msra.mxu0 0.0
    %531 = vmatprep.subr.mxu0 0.0
    %532 = vmatpush1.msra.mxu0 0.0
    %533 = vmatprep.subr.mxu0 0.0
    %534 = vmatpush1.msra.mxu0 0.0
    %535 = vmatprep.subr.mxu0 0.0
    %536 = vmatpush1.msra.mxu0 0.0
    %537 = vmatprep.subr.mxu0 0.0
    %538 = vmatpush1.msra.mxu0 0.0
    %539 = vmatprep.subr.mxu0 0.0
    %540 = vmatpush1.msra.mxu0 0.0
    %541 = vmatprep.subr.mxu0 0.0
    %542 = vmatpush1.msra.mxu0 0.0
    %543 = vmatprep.subr.mxu0 0.0
    %544 = vmatpush1.msra.mxu0 0.0
    %545 = vmatprep.subr.mxu0 0.0
    %546 = vmatpush1.msra.mxu0 0.0
    %547 = vmatprep.subr.mxu0 0.0
    %548 = vmatpush1.msra.mxu0 0.0
    %549 = vmatprep.subr.mxu0 0.0
    %550 = vmatpush1.msra.mxu0 0.0
    %551 = vmatprep.subr.mxu0 0.0
    %552 = vmatpush1.msra.mxu0 0.0
    %553 = vmatprep.subr.mxu0 0.0
    %554 = vmatpush1.msra.mxu0 0.0
    %555 = vmatprep.mubr.f32.mxu0 0.0
    %556 = vmatmul.mubr.f32.gmra.mrb[0].mxu0 %v489
    %v557 = vpop.f32.mrb[0].mxu0
    %v558 = vadd.f32 0.0, %v557
    %v559 = vpop.f32.mrb[0].mxu0
    %560 = vdwg.mxu0
    %v562 = vrot.slane %v558, 2
    %v564 = vadd.f32 %v137, %v562
    %v565 = vtanh.pop %v564
    %v566 = vadd.f32 %v565, 1.0
    %v567 = vmul.f32 %v566, 0.5
    %v569 = vrot.slane %v465, 6
    %v571 = vmul.f32 %v567, %v569
    %573 = vrot.lane.b32.xlu0 %v565, 64
    %v574 = vpop.permute.xlu0 %573
    %v576 = vmul.f32 %v567, %v574
    %578 = vrot.lane.b32.xlu0 %v576, 32
    %v579 = vpop.permute.xlu0 %578
    %v581 = vadd.f32 %v571, %v579
    %v582 = vtanh.pop %v581
    %584 = vrot.lane.b32.xlu0 %v582, 64
    %v585 = vpop.permute.xlu0 %584
    %v587 = vmul.f32 %v567, %v585
    %v589 = vlaneseq
    %v590 = vshrl.u32 %v589, 7
    %v591 = vsub.s32 0, %v590
    %v592 = vrot.slane %v43, %v591
    %593 = vrot.lane.b32.xlu0 %v592, 96
    %v594 = vpop.permute.xlu0 %593
    %v596 = vmul.f32 %v587, %v594
    %v598 = vrot.slane %v596, 6
    %v600 = vadd.f32 %v484, %v598
    %v602 = vrot.slane %v587, 6
    %603 = vrot.lane.b32.xlu0 %v602, 32
    %v604 = vpop.permute.xlu0 %603
    %v605 = vsel %vm145, %v604, 0
    %607 = vmatprep.subr.mxu0 0.0
    %608 = vmatpush1.msra.mxu0 %v37
    %609 = vmatprep.subr.mxu0 0.0
    %610 = vmatpush1.msra.mxu0 %v38
    %611 = vmatprep.subr.mxu0 0.0
    %612 = vmatpush1.msra.mxu0 %v151
    %613 = vmatprep.subr.mxu0 0.0
    %614 = vmatpush1.msra.mxu0 0.0
    %615 = vmatprep.subr.mxu0 0.0
    %616 = vmatpush1.msra.mxu0 0.0
    %617 = vmatprep.subr.mxu0 0.0
    %618 = vmatpush1.msra.mxu0 0.0
    %619 = vmatprep.subr.mxu0 0.0
    %620 = vmatpush1.msra.mxu0 0.0
    %621 = vmatprep.subr.mxu0 0.0
    %622 = vmatpush1.msra.mxu0 0.0
    %623 = vmatprep.subr.mxu0 0.0
    %624 = vmatpush1.msra.mxu0 0.0
    %625 = vmatprep.subr.mxu0 0.0
    %626 = vmatpush1.msra.mxu0 0.0
    %627 = vmatprep.subr.mxu0 0.0
    %628 = vmatpush1.msra.mxu0 0.0
    %629 = vmatprep.subr.mxu0 0.0
    %630 = vmatpush1.msra.mxu0 0.0
    %631 = vmatprep.subr.mxu0 0.0
    %632 = vmatpush1.msra.mxu0 0.0
    %633 = vmatprep.subr.mxu0 0.0
    %634 = vmatpush1.msra.mxu0 0.0
    %635 = vmatprep.subr.mxu0 0.0
    %636 = vmatpush1.msra.mxu0 0.0
    %637 = vmatprep.subr.mxu0 0.0
    %638 = vmatpush1.msra.mxu0 0.0
    %639 = vmatprep.subr.mxu0 0.0
    %640 = vmatpush1.msra.mxu0 0.0
    %641 = vmatprep.subr.mxu0 0.0
    %642 = vmatpush1.msra.mxu0 0.0
    %643 = vmatprep.subr.mxu0 0.0
    %644 = vmatpush1.msra.mxu0 0.0
    %645 = vmatprep.subr.mxu0 0.0
    %646 = vmatpush1.msra.mxu0 0.0
    %647 = vmatprep.subr.mxu0 0.0
    %648 = vmatpush1.msra.mxu0 0.0
    %649 = vmatprep.subr.mxu0 0.0
    %650 = vmatpush1.msra.mxu0 0.0
    %651 = vmatprep.subr.mxu0 0.0
    %652 = vmatpush1.msra.mxu0 0.0
    %653 = vmatprep.subr.mxu0 0.0
    %654 = vmatpush1.msra.mxu0 0.0
    %655 = vmatprep.subr.mxu0 0.0
    %656 = vmatpush1.msra.mxu0 0.0
    %657 = vmatprep.subr.mxu0 0.0
    %658 = vmatpush1.msra.mxu0 0.0
    %659 = vmatprep.subr.mxu0 0.0
    %660 = vmatpush1.msra.mxu0 0.0
    %661 = vmatprep.subr.mxu0 0.0
    %662 = vmatpush1.msra.mxu0 0.0
    %663 = vmatprep.subr.mxu0 0.0
    %664 = vmatpush1.msra.mxu0 0.0
    %665 = vmatprep.subr.mxu0 0.0
    %666 = vmatpush1.msra.mxu0 0.0
    %667 = vmatprep.subr.mxu0 0.0
    %668 = vmatpush1.msra.mxu0 0.0
    %669 = vmatprep.subr.mxu0 0.0
    %670 = vmatpush1.msra.mxu0 0.0
    %671 = vmatprep.mubr.f32.mxu0 0.0
    %672 = vmatmul.mubr.f32.gmra.mrb[0].mxu0 %v605
    %v673 = vpop.f32.mrb[0].mxu0
    %v674 = vadd.f32 0.0, %v673
    %v675 = vpop.f32.mrb[0].mxu0
    %676 = vdwg.mxu0
    %v677 = vadd.f32 %v142, %v674
    %v678 = vtanh.pop %v677
    %v679 = vadd.f32 %v678, 1.0
    %v680 = vmul.f32 %v679, 0.5
    %v682 = vrot.slane %v581, 6
    %v684 = vmul.f32 %v680, %v682
    %686 = vrot.lane.b32.xlu0 %v678, 64
    %v687 = vpop.permute.xlu0 %686
    %v689 = vmul.f32 %v680, %v687
    %691 = vrot.lane.b32.xlu0 %v689, 32
    %v692 = vpop.permute.xlu0 %691
    %v694 = vadd.f32 %v684, %v692
    %v695 = vtanh.pop %v694
    %697 = vrot.lane.b32.xlu0 %v695, 64
    %v698 = vpop.permute.xlu0 %697
    %v700 = vmul.f32 %v680, %v698
    %v702 = vlaneseq
    %v703 = vshrl.u32 %v702, 7
    %v704 = vsub.s32 0, %v703
    %v705 = vrot.slane %v44, %v704
    %706 = vrot.lane.b32.xlu0 %v705, 96
    %v707 = vpop.permute.xlu0 %706
    %v709 = vmul.f32 %v700, %v707
    %v710 = vadd.f32 %v600, %v709
    %712 = vrot.lane.b32.xlu0 %v700, 32
    %v713 = vpop.permute.xlu0 %712
    %v714 = vsel %vm145, %v713, 0
    %716 = vmatprep.subr.mxu0 0.0
    %717 = vmatpush1.msra.mxu0 %v37
    %718 = vmatprep.subr.mxu0 0.0
    %719 = vmatpush1.msra.mxu0 %v38
    %720 = vmatprep.subr.mxu0 0.0
    %721 = vmatpush1.msra.mxu0 %v151
    %722 = vmatprep.subr.mxu0 0.0
    %723 = vmatpush1.msra.mxu0 0.0
    %724 = vmatprep.subr.mxu0 0.0
    %725 = vmatpush1.msra.mxu0 0.0
    %726 = vmatprep.subr.mxu0 0.0
    %727 = vmatpush1.msra.mxu0 0.0
    %728 = vmatprep.subr.mxu0 0.0
    %729 = vmatpush1.msra.mxu0 0.0
    %730 = vmatprep.subr.mxu0 0.0
    %731 = vmatpush1.msra.mxu0 0.0
    %732 = vmatprep.subr.mxu0 0.0
    %733 = vmatpush1.msra.mxu0 0.0
    %734 = vmatprep.subr.mxu0 0.0
    %735 = vmatpush1.msra.mxu0 0.0
    %736 = vmatprep.subr.mxu0 0.0
    %737 = vmatpush1.msra.mxu0 0.0
    %738 = vmatprep.subr.mxu0 0.0
    %739 = vmatpush1.msra.mxu0 0.0
    %740 = vmatprep.subr.mxu0 0.0
    %741 = vmatpush1.msra.mxu0 0.0
    %742 = vmatprep.subr.mxu0 0.0
    %743 = vmatpush1.msra.mxu0 0.0
    %744 = vmatprep.subr.mxu0 0.0
    %745 = vmatpush1.msra.mxu0 0.0
    %746 = vmatprep.subr.mxu0 0.0
    %747 = vmatpush1.msra.mxu0 0.0
    %748 = vmatprep.subr.mxu0 0.0
    %749 = vmatpush1.msra.mxu0 0.0
    %750 = vmatprep.subr.mxu0 0.0
    %751 = vmatpush1.msra.mxu0 0.0
    %752 = vmatprep.subr.mxu0 0.0
    %753 = vmatpush1.msra.mxu0 0.0
    %754 = vmatprep.subr.mxu0 0.0
    %755 = vmatpush1.msra.mxu0 0.0
    %756 = vmatprep.subr.mxu0 0.0
    %757 = vmatpush1.msra.mxu0 0.0
    %758 = vmatprep.subr.mxu0 0.0
    %759 = vmatpush1.msra.mxu0 0.0
    %760 = vmatprep.subr.mxu0 0.0
    %761 = vmatpush1.msra.mxu0 0.0
    %762 = vmatprep.subr.mxu0 0.0
    %763 = vmatpush1.msra.mxu0 0.0
    %764 = vmatprep.subr.mxu0 0.0
    %765 = vmatpush1.msra.mxu0 0.0
    %766 = vmatprep.subr.mxu0 0.0
    %767 = vmatpush1.msra.mxu0 0.0
    %768 = vmatprep.subr.mxu0 0.0
    %769 = vmatpush1.msra.mxu0 0.0
    %770 = vmatprep.subr.mxu0 0.0
    %771 = vmatpush1.msra.mxu0 0.0
    %772 = vmatprep.subr.mxu0 0.0
    %773 = vmatpush1.msra.mxu0 0.0
    %774 = vmatprep.subr.mxu0 0.0
    %775 = vmatpush1.msra.mxu0 0.0
    %776 = vmatprep.subr.mxu0 0.0
    %777 = vmatpush1.msra.mxu0 0.0
    %778 = vmatprep.subr.mxu0 0.0
    %779 = vmatpush1.msra.mxu0 0.0
    %780 = vmatprep.mubr.f32.mxu0 0.0
    %781 = vmatmul.mubr.f32.gmra.mrb[0].mxu0 %v714
    %v782 = vpop.f32.mrb[0].mxu0
    %v783 = vadd.f32 0.0, %v782
    %v784 = vpop.f32.mrb[0].mxu0
    %785 = vdwg.mxu0
    %v787 = vrot.slane %v783, 6
    %v789 = vadd.f32 %v142, %v787
    %v790 = vtanh.pop %v789
    %v791 = vadd.f32 %v790, 1.0
    %v792 = vmul.f32 %v791, 0.5
    %v794 = vrot.slane %v694, 6
    %v796 = vmul.f32 %v792, %v794
    %798 = vrot.lane.b32.xlu0 %v790, 64
    %v799 = vpop.permute.xlu0 %798
    %v801 = vmul.f32 %v792, %v799
    %803 = vrot.lane.b32.xlu0 %v801, 32
    %v804 = vpop.permute.xlu0 %803
    %v806 = vadd.f32 %v796, %v804
    %v807 = vtanh.pop %v806
    %809 = vrot.lane.b32.xlu0 %v807, 64
    %v810 = vpop.permute.xlu0 %809
    %v812 = vmul.f32 %v792, %v810
    %v814 = vlaneseq
    %v815 = vshrl.u32 %v814, 7
    %v816 = vsub.s32 0, %v815
    %v817 = vrot.slane %v45, %v816
    %818 = vrot.lane.b32.xlu0 %v817, 96
    %v819 = vpop.permute.xlu0 %818
    %v821 = vmul.f32 %v812, %v819
    %v823 = vrot.slane %v821, 2
    %v825 = vadd.f32 %v710, %v823
    %v827 = vrot.slane %v812, 2
    %828 = vrot.lane.b32.xlu0 %v827, 32
    %v829 = vpop.permute.xlu0 %828
    %v830 = vsel %vm145, %v829, 0
    %832 = vmatprep.subr.mxu0 0.0
    %833 = vmatpush1.msra.mxu0 %v37
    %834 = vmatprep.subr.mxu0 0.0
    %835 = vmatpush1.msra.mxu0 %v38
    %836 = vmatprep.subr.mxu0 0.0
    %837 = vmatpush1.msra.mxu0 %v151
    %838 = vmatprep.subr.mxu0 0.0
    %839 = vmatpush1.msra.mxu0 0.0
    %840 = vmatprep.subr.mxu0 0.0
    %841 = vmatpush1.msra.mxu0 0.0
    %842 = vmatprep.subr.mxu0 0.0
    %843 = vmatpush1.msra.mxu0 0.0
    %844 = vmatprep.subr.mxu0 0.0
    %845 = vmatpush1.msra.mxu0 0.0
    %846 = vmatprep.subr.mxu0 0.0
    %847 = vmatpush1.msra.mxu0 0.0
    %848 = vmatprep.subr.mxu0 0.0
    %849 = vmatpush1.msra.mxu0 0.0
    %850 = vmatprep.subr.mxu0 0.0
    %851 = vmatpush1.msra.mxu0 0.0
    %852 = vmatprep.subr.mxu0 0.0
    %853 = vmatpush1.msra.mxu0 0.0
    %854 = vmatprep.subr.mxu0 0.0
    %855 = vmatpush1.msra.mxu0 0.0
    %856 = vmatprep.subr.mxu0 0.0
    %857 = vmatpush1.msra.mxu0 0.0
    %858 = vmatprep.subr.mxu0 0.0
    %859 = vmatpush1.msra.mxu0 0.0
    %860 = vmatprep.subr.mxu0 0.0
    %861 = vmatpush1.msra.mxu0 0.0
    %862 = vmatprep.subr.mxu0 0.0
    %863 = vmatpush1.msra.mxu0 0.0
    %864 = vmatprep.subr.mxu0 0.0
    %865 = vmatpush1.msra.mxu0 0.0
    %866 = vmatprep.subr.mxu0 0.0
    %867 = vmatpush1.msra.mxu0 0.0
    %868 = vmatprep.subr.mxu0 0.0
    %869 = vmatpush1.msra.mxu0 0.0
    %870 = vmatprep.subr.mxu0 0.0
    %871 = vmatpush1.msra.mxu0 0.0
    %872 = vmatprep.subr.mxu0 0.0
    %873 = vmatpush1.msra.mxu0 0.0
    %874 = vmatprep.subr.mxu0 0.0
    %875 = vmatpush1.msra.mxu0 0.0
    %876 = vmatprep.subr.mxu0 0.0
    %877 = vmatpush1.msra.mxu0 0.0
    %878 = vmatprep.subr.mxu0 0.0
    %879 = vmatpush1.msra.mxu0 0.0
    %880 = vmatprep.subr.mxu0 0.0
    %881 = vmatpush1.msra.mxu0 0.0
    %882 = vmatprep.subr.mxu0 0.0
    %883 = vmatpush1.msra.mxu0 0.0
    %884 = vmatprep.subr.mxu0 0.0
    %885 = vmatpush1.msra.mxu0 0.0
    %886 = vmatprep.subr.mxu0 0.0
    %887 = vmatpush1.msra.mxu0 0.0
    %888 = vmatprep.subr.mxu0 0.0
    %889 = vmatpush1.msra.mxu0 0.0
    %890 = vmatprep.subr.mxu0 0.0
    %891 = vmatpush1.msra.mxu0 0.0
    %892 = vmatprep.subr.mxu0 0.0
    %893 = vmatpush1.msra.mxu0 0.0
    %894 = vmatprep.subr.mxu0 0.0
    %895 = vmatpush1.msra.mxu0 0.0
    %896 = vmatprep.mubr.f32.mxu0 0.0
    %897 = vmatmul.mubr.f32.gmra.mrb[0].mxu0 %v830
    %v898 = vpop.f32.mrb[0].mxu0
    %v899 = vadd.f32 0.0, %v898
    %v900 = vpop.f32.mrb[0].mxu0
    %901 = vdwg.mxu0
    %v903 = vrot.slane %v899, 4
    %v905 = vadd.f32 %v142, %v903
    %v906 = vtanh.pop %v905
    %v907 = vadd.f32 %v906, 1.0
    %v908 = vmul.f32 %v907, 0.5
    %v910 = vrot.slane %v806, 6
    %v912 = vmul.f32 %v908, %v910
    %914 = vrot.lane.b32.xlu0 %v906, 64
    %v915 = vpop.permute.xlu0 %914
    %v917 = vmul.f32 %v908, %v915
    %919 = vrot.lane.b32.xlu0 %v917, 32
    %v920 = vpop.permute.xlu0 %919
    %v922 = vadd.f32 %v912, %v920
    %v923 = vtanh.pop %v922
    %925 = vrot.lane.b32.xlu0 %v923, 64
    %v926 = vpop.permute.xlu0 %925
    %v928 = vmul.f32 %v908, %v926
    %v930 = vlaneseq
    %v931 = vshrl.u32 %v930, 7
    %v932 = vsub.s32 0, %v931
    %v933 = vrot.slane %v46, %v932
    %934 = vrot.lane.b32.xlu0 %v933, 96
    %v935 = vpop.permute.xlu0 %934
    %v937 = vmul.f32 %v928, %v935
    %v939 = vrot.slane %v937, 4
    %v941 = vadd.f32 %v825, %v939
    %v943 = vrot.slane %v928, 4
    %944 = vrot.lane.b32.xlu0 %v943, 32
    %v945 = vpop.permute.xlu0 %944
    %v946 = vsel %vm145, %v945, 0
    %948 = vmatprep.subr.mxu0 0.0
    %949 = vmatpush1.msra.mxu0 %v37
    %950 = vmatprep.subr.mxu0 0.0
    %951 = vmatpush1.msra.mxu0 %v38
    %952 = vmatprep.subr.mxu0 0.0
    %953 = vmatpush1.msra.mxu0 %v151
    %954 = vmatprep.subr.mxu0 0.0
    %955 = vmatpush1.msra.mxu0 0.0
    %956 = vmatprep.subr.mxu0 0.0
    %957 = vmatpush1.msra.mxu0 0.0
    %958 = vmatprep.subr.mxu0 0.0
    %959 = vmatpush1.msra.mxu0 0.0
    %960 = vmatprep.subr.mxu0 0.0
    %961 = vmatpush1.msra.mxu0 0.0
    %962 = vmatprep.subr.mxu0 0.0
    %963 = vmatpush1.msra.mxu0 0.0
    %964 = vmatprep.subr.mxu0 0.0
    %965 = vmatpush1.msra.mxu0 0.0
    %966 = vmatprep.subr.mxu0 0.0
    %967 = vmatpush1.msra.mxu0 0.0
    %968 = vmatprep.subr.mxu0 0.0
    %969 = vmatpush1.msra.mxu0 0.0
    %970 = vmatprep.subr.mxu0 0.0
    %971 = vmatpush1.msra.mxu0 0.0
    %972 = vmatprep.subr.mxu0 0.0
    %973 = vmatpush1.msra.mxu0 0.0
    %974 = vmatprep.subr.mxu0 0.0
    %975 = vmatpush1.msra.mxu0 0.0
    %976 = vmatprep.subr.mxu0 0.0
    %977 = vmatpush1.msra.mxu0 0.0
    %978 = vmatprep.subr.mxu0 0.0
    %979 = vmatpush1.msra.mxu0 0.0
    %980 = vmatprep.subr.mxu0 0.0
    %981 = vmatpush1.msra.mxu0 0.0
    %982 = vmatprep.subr.mxu0 0.0
    %983 = vmatpush1.msra.mxu0 0.0
    %984 = vmatprep.subr.mxu0 0.0
    %985 = vmatpush1.msra.mxu0 0.0
    %986 = vmatprep.subr.mxu0 0.0
    %987 = vmatpush1.msra.mxu0 0.0
    %988 = vmatprep.subr.mxu0 0.0
    %989 = vmatpush1.msra.mxu0 0.0
    %990 = vmatprep.subr.mxu0 0.0
    %991 = vmatpush1.msra.mxu0 0.0
    %992 = vmatprep.subr.mxu0 0.0
    %993 = vmatpush1.msra.mxu0 0.0
    %994 = vmatprep.subr.mxu0 0.0
    %995 = vmatpush1.msra.mxu0 0.0
    %996 = vmatprep.subr.mxu0 0.0
    %997 = vmatpush1.msra.mxu0 0.0
    %998 = vmatprep.subr.mxu0 0.0
    %999 = vmatpush1.msra.mxu0 0.0
    %1000 = vmatprep.subr.mxu0 0.0
    %1001 = vmatpush1.msra.mxu0 0.0
    %1002 = vmatprep.subr.mxu0 0.0
    %1003 = vmatpush1.msra.mxu0 0.0
    %1004 = vmatprep.subr.mxu0 0.0
    %1005 = vmatpush1.msra.mxu0 0.0
    %1006 = vmatprep.subr.mxu0 0.0
    %1007 = vmatpush1.msra.mxu0 0.0
    %1008 = vmatprep.subr.mxu0 0.0
    %1009 = vmatpush1.msra.mxu0 0.0
    %1010 = vmatprep.subr.mxu0 0.0
    %1011 = vmatpush1.msra.mxu0 0.0
    %1012 = vmatprep.mubr.f32.mxu0 0.0
    %1013 = vmatmul.mubr.f32.gmra.mrb[0].mxu0 %v946
    %v1014 = vpop.f32.mrb[0].mxu0
    %v1015 = vadd.f32 0.0, %v1014
    %v1016 = vpop.f32.mrb[0].mxu0
    %1017 = vdwg.mxu0
    %v1019 = vrot.slane %v1015, 2
    %v1021 = vadd.f32 %v142, %v1019
    %v1022 = vtanh.pop %v1021
    %v1023 = vadd.f32 %v1022, 1.0
    %v1024 = vmul.f32 %v1023, 0.5
    %v1026 = vrot.slane %v922, 6
    %v1028 = vmul.f32 %v1024, %v1026
    %1030 = vrot.lane.b32.xlu0 %v1022, 64
    %v1031 = vpop.permute.xlu0 %1030
    %v1033 = vmul.f32 %v1024, %v1031
    %1035 = vrot.lane.b32.xlu0 %v1033, 32
    %v1036 = vpop.permute.xlu0 %1035
    %v1038 = vadd.f32 %v1028, %v1036
    %v1039 = vtanh.pop %v1038
    %1041 = vrot.lane.b32.xlu0 %v1039, 64
    %v1042 = vpop.permute.xlu0 %1041
    %v1044 = vmul.f32 %v1024, %v1042
    %v1046 = vlaneseq
    %v1047 = vshrl.u32 %v1046, 7
    %v1048 = vsub.s32 0, %v1047
    %v1049 = vrot.slane %v47, %v1048
    %1050 = vrot.lane.b32.xlu0 %v1049, 96
    %v1051 = vpop.permute.xlu0 %1050
    %v1053 = vmul.f32 %v1044, %v1051
    %v1055 = vrot.slane %v1053, 6
    %v1057 = vadd.f32 %v941, %v1055
    %1059 = vrot.lane.b32.xlu0 %v1057, 32
    %v1060 = vpop.permute.xlu0 %1059
    %vm1062 = vcmask 156672
    %v1063 = vsel %vm1062, %v1060, 0.0
    %1064 = vadd.xlane.f32.xlu0 %v1063
    %v1065 = vpop.xlane.xlu0 %1064
    %v1067 = vlaneseq
    %v1068 = vshrl.u32 %v1067, 7
    %v1069 = vsub.s32 0, %v1068
    %v1070 = vrot.slane %v48, %v1069
    %v1072 = vadd.f32 %v1065, %v1070
    %vm1073 = vcmask 1024
    %1074 = vst.msk [vmem:[%s6] sm:$0x3] %vm1073, %v1072
    // Predicated region
    $region30: #{tpu_custom_call.1} parent=1 // pred_check
      _
    $region31: #{tpu_custom_call.1} parent=1 // pred_check_branch
      %1076 = sbr.rel (0) target = $region33
    $region32: #{tpu_custom_call.1} parent=1 // pred_region
      _
    $region33: #{tpu_custom_call.1} parent=1 // pred_fallthru
      _
    // Predicated region
    $region34: #{tpu_custom_call.1} parent=1 // pred_check
      _
    $region35: #{tpu_custom_call.1} parent=1 // pred_check_branch
      %1078 = sbr.rel (0) target = $region37
    $region36: #{tpu_custom_call.1} parent=1 // pred_region
      _
    $region37: #{tpu_custom_call.1} parent=1 // pred_fallthru
      _
    %1079 = vsyncpa [#allocation4], 1

</llo_original>
